<compile_context>
chip_gen: v7x
topology: tpu7x:2x2x1
jax: 0.10.0
libtpu: 0.0.40
codegen_flags: <defaults>
</compile_context>

<pallas_src>
import jax
import jax.numpy as jnp
from jax.experimental import pallas as pl
from jax.experimental.pallas import tpu as pltpu


def _sum_src_chunks(slab, n_chunks, f):
    """slab: (rows, n_chunks*f) -> (rows, f), summing the f-wide lane chunks
    with a halving add tree (lane-aligned static slices only)."""
    if f == 1:
        return jnp.sum(slab, axis=1, keepdims=True)
    while n_chunks > 1:
        if n_chunks % 2:
            # fold the odd trailing chunk into the first chunk
            head = slab[:, :f] + slab[:, (n_chunks - 1) * f:n_chunks * f]
            slab = jnp.concatenate([head, slab[:, f:(n_chunks - 1) * f]], axis=1)
            n_chunks -= 1
        half = n_chunks // 2
        slab = slab[:, :half * f] + slab[:, half * f:n_chunks * f]
        n_chunks = half
    return slab


def _make_fused_kernel(layer_dims, bias_row, slot_width, n_nodes):
    """Build a kernel running all ResGatedGraphConv layers (ReLU between
    layers, none after the last) in one invocation.

    layer_dims: list of (f_in, f_out) per layer (static Python ints).
    Kernel args: x_ref (N, F0), adj_ref (N, N), params_ref
    (n_layers, rows_pad, 4*slot_width), out_ref (N, f_final)."""

    n = n_nodes
    n_layers = len(layer_dims)

    def kernel(x_ref, adj_ref, params_ref, out_ref):
        adj = adj_ref[...].astype(jnp.float32)          # (N, N), adj[i, j]: #edges j->i
        h = x_ref[...].astype(jnp.float32)              # (N, F0)

        # adj expanded to lane-dense (N, N*f) form -- layer independent, so
        # build it once per distinct f (trace-time cache).
        adj_rep_cache = {}

        def adj_rep_for(f):
            if f not in adj_rep_cache:
                if f == 1:
                    adj_rep_cache[f] = adj
                else:
                    adj_rep_cache[f] = jnp.concatenate(
                        [jnp.broadcast_to(adj[:, j:j + 1], (n, f)) for j in range(n)],
                        axis=1)
            return adj_rep_cache[f]

        for l, (f_in, f_out) in enumerate(layer_dims):
            layer_p = params_ref[l]                     # (rows_pad, 4*slot_width)
            w = layer_p[:f_in, :]                       # packed [Wk|Wq|Wv|Wskip]
            b = layer_p[bias_row:bias_row + 1, :]       # [bk+bq | 0 | bv | bias]

            # One MXU matmul + one broadcast bias add for all four projections.
            kqvs = jnp.dot(h, w, preferred_element_type=jnp.float32) + b   # (N, 4*slot)
            k = kqvs[:, 0 * slot_width:0 * slot_width + f_out]
            q = kqvs[:, 1 * slot_width:1 * slot_width + f_out]
            v = kqvs[:, 2 * slot_width:2 * slot_width + f_out]
            s = kqvs[:, 3 * slot_width:3 * slot_width + f_out]   # skip + output bias

            # Lane-dense (N_dst, N_src*f_out) slabs (no reshapes, only lane
            # concats / broadcasts): slab[i, j*f + c] indexes (dst i, src j, feat c).
            k_tiled = jnp.concatenate([k] * n, axis=1)                               # (N, N*f)
            q_flat = jnp.concatenate([q[j:j + 1, :] for j in range(n)], axis=1)      # (1, N*f)
            v_flat = jnp.concatenate([v[j:j + 1, :] for j in range(n)], axis=1)      # (1, N*f)

            gate = jax.nn.sigmoid(k_tiled + q_flat)      # dense EUP/VPU, full lanes
            msg = gate * v_flat * adj_rep_for(f_out)     # single live (N, N*f) slab

            agg = _sum_src_chunks(msg, n, f_out)         # (N, f_out)

            h = agg + s
            if l < n_layers - 1:
                h = jnp.maximum(h, 0.0)

        out_ref[...] = h.astype(out_ref.dtype)

    return kernel


def _pack_params(layer_params, slot_width, rows_pad, bias_row):
    """Pack all layers into one (n_layers, rows_pad, 4*slot_width) f32 buffer.
    Weight rows 0:f_in hold [Wk|Wq|Wv|Wskip] (zero padded per slot); the
    bias_row holds [bk+bq | 0 | bv | output_bias]  (output bias folded into
    the skip slot)."""
    width = 4 * slot_width
    bufs = []
    for p in layer_params:
        f_in, f_out = p["wk"].shape
        slab = jnp.zeros((rows_pad, width), jnp.float32)
        slab = slab.at[:f_in, 0 * slot_width:0 * slot_width + f_out].set(p["wk"])
        slab = slab.at[:f_in, 1 * slot_width:1 * slot_width + f_out].set(p["wq"])
        slab = slab.at[:f_in, 2 * slot_width:2 * slot_width + f_out].set(p["wv"])
        slab = slab.at[:f_in, 3 * slot_width:3 * slot_width + f_out].set(p["ws"])
        slab = slab.at[bias_row, 0 * slot_width:0 * slot_width + f_out].set(
            (p["bk"] + p["bq"])[0])
        slab = slab.at[bias_row, 2 * slot_width:2 * slot_width + f_out].set(p["bv"][0])
        slab = slab.at[bias_row, 3 * slot_width:3 * slot_width + f_out].set(p["bias"][0])
        bufs.append(slab)
    return jnp.stack(bufs, axis=0)


def gatskip_forward(x, adj, layer_params):
    """Matches GATskip.forward: (conv -> relu) * (n_layers-1), then conv_out,
    all inside one fused pallas_call with 3 operands."""
    n = x.shape[0]
    dims = [(p["wk"].shape[0], p["wk"].shape[1]) for p in layer_params]
    f_final = dims[-1][1]
    slot_width = max(f for _, f in dims)
    f_in_max = max(f for f, _ in dims)
    bias_row = f_in_max
    rows_pad = ((f_in_max + 1 + 7) // 8) * 8

    params = _pack_params(layer_params, slot_width, rows_pad, bias_row)

    flops = 0
    transcendentals = 0
    for f_in, f_out in dims:
        flops += 2 * n * f_in * 4 * slot_width      # packed projection matmul
        flops += 6 * n * n * f_out                  # gate/message/reduce elementwise
        transcendentals += n * n * f_out            # sigmoid
    bytes_accessed = 4 * (int(x.size) + int(adj.size) + int(params.size) + n * f_final)

    vmem = pl.BlockSpec(memory_space=pltpu.MemorySpace.VMEM)
    return pl.pallas_call(
        _make_fused_kernel(dims, bias_row, slot_width, n),
        out_shape=jax.ShapeDtypeStruct((n, f_final), jnp.float32),
        in_specs=[vmem, vmem, vmem],
        out_specs=vmem,
        compiler_params=pltpu.CompilerParams(vmem_limit_bytes=32 * 1024 * 1024),
        cost_estimate=pl.CostEstimate(
            flops=int(flops),
            transcendentals=int(transcendentals),
            bytes_accessed=int(bytes_accessed)),
    )(x, adj, params)


# ---------------- pure-JAX reference for verification ----------------
def _ref_layer(x, adj, p, apply_relu):
    k = x @ p["wk"] + p["bk"]
    q = x @ p["wq"] + p["bq"]
    v = x @ p["wv"] + p["bv"]
    skip = x @ p["ws"]
    gate = jax.nn.sigmoid(k[:, None, :] + q[None, :, :])
    agg = jnp.sum(adj[:, :, None] * (gate * v[None, :, :]), axis=1)
    out = agg + skip + p["bias"]
    return jnp.maximum(out, 0.0) if apply_relu else out


def _ref_forward(x, adj, layer_params):
    for p in layer_params[:-1]:
        x = _ref_layer(x, adj, p, True)
    return _ref_layer(x, adj, layer_params[-1], False)


def _init_layer(key, f_in, f_out):
    ks = jax.random.split(key, 5)
    s = 1.0 / jnp.sqrt(jnp.float32(f_in))
    return {
        "wk": jax.random.uniform(ks[0], (f_in, f_out), jnp.float32, -s, s),
        "bk": jnp.zeros((1, f_out), jnp.float32),
        "wq": jax.random.uniform(ks[1], (f_in, f_out), jnp.float32, -s, s),
        "bq": jnp.zeros((1, f_out), jnp.float32),
        "wv": jax.random.uniform(ks[2], (f_in, f_out), jnp.float32, -s, s),
        "bv": jnp.zeros((1, f_out), jnp.float32),
        "ws": jax.random.uniform(ks[3], (f_in, f_out), jnp.float32, -s, s),
        "bias": jax.random.uniform(ks[4], (1, f_out), jnp.float32, -s, s),
    }


if __name__ == "__main__":
    # config: GNN_n_layers=3, GNN_hidden_dim=32, GNN_att_head=2 (unused)
    N_LAYERS, HIDDEN = 3, 32
    N_NODES, F_IN, N_EDGES = 8, 16, 24

    key = jax.random.PRNGKey(0)
    kx, ke, kp = jax.random.split(key, 3)

    x = jax.random.normal(kx, (N_NODES, F_IN), jnp.float32)
    edge_index = jax.random.randint(ke, (2, N_EDGES), 0, N_NODES)  # [src; dst]

    # Dense adjacency from edge_index (glue, outside the kernel).
    src, dst = edge_index[0], edge_index[1]
    adj = jnp.zeros((N_NODES, N_NODES), jnp.float32).at[dst, src].add(1.0)

    # Layer dims: F_IN -> HIDDEN -> HIDDEN -> 1
    dims = [F_IN] + [HIDDEN] * (N_LAYERS - 1) + [1]
    pkeys = jax.random.split(kp, N_LAYERS)
    layer_params = [_init_layer(pkeys[i], dims[i], dims[i + 1])
                    for i in range(N_LAYERS)]

    out = gatskip_forward(x, adj, layer_params)
    out = jax.block_until_ready(out)

    ref = _ref_forward(x, adj, layer_params)
    assert out.shape == (N_NODES, 1)
    assert jnp.allclose(out, ref, atol=1e-4, rtol=1e-4)

    print("KERNEL_OK")
</pallas_src>

<mosaic_0001>
module attributes {stable_mosaic.version = 11 : i64} {
  func.func @kernel(%arg0: memref<8x16xf32, #tpu.memory_space<vmem>>, %arg1: memref<8x8xf32, #tpu.memory_space<vmem>>, %arg2: memref<3x40x128xf32, #tpu.memory_space<vmem>>, %arg3: memref<8x1xf32, #tpu.memory_space<vmem>>) attributes {dimension_semantics = [], scalar_prefetch = 0 : i64, scratch_operands = 0 : i64, tpu.core_type = #tpu.core_type<tc>} {
    %c0 = arith.constant 0 : index
    %c0_0 = arith.constant 0 : index
    %0 = vector.load %arg1[%c0, %c0_0] : memref<8x8xf32, #tpu.memory_space<vmem>>, vector<8x8xf32>
    %c0_1 = arith.constant 0 : index
    %c0_2 = arith.constant 0 : index
    %1 = vector.load %arg0[%c0_1, %c0_2] : memref<8x16xf32, #tpu.memory_space<vmem>>, vector<8x16xf32>
    %c0_3 = arith.constant 0 : index
    %c0_4 = arith.constant 0 : index
    %c0_5 = arith.constant 0 : index
    %2 = vector.load %arg2[%c0_3, %c0_4, %c0_5] : memref<3x40x128xf32, #tpu.memory_space<vmem>>, vector<1x40x128xf32>
    %3 = vector.shape_cast %2 : vector<1x40x128xf32> to vector<40x128xf32>
    %4 = vector.extract_strided_slice %3 {offsets = [0, 0], sizes = [16, 128], strides = [1, 1]} : vector<40x128xf32> to vector<16x128xf32>
    %5 = vector.extract_strided_slice %3 {offsets = [32, 0], sizes = [1, 128], strides = [1, 1]} : vector<40x128xf32> to vector<1x128xf32>
    %cst = arith.constant dense<0.000000e+00> : vector<8x128xf32>
    %6 = tpu.matmul %1, %4, %cst {dimension_numbers = #tpu.dot_dimension_numbers<[1], [0], [0], [1], [0, 0, 1, 1], [], []>} : vector<8x16xf32>, vector<16x128xf32>, vector<8x128xf32> -> vector<8x128xf32>
    %7 = vector.broadcast %5 : vector<1x128xf32> to vector<8x128xf32>
    %8 = arith.addf %6, %7 : vector<8x128xf32>
    %9 = vector.extract_strided_slice %8 {offsets = [0, 0], sizes = [8, 32], strides = [1, 1]} : vector<8x128xf32> to vector<8x32xf32>
    %10 = vector.extract_strided_slice %8 {offsets = [0, 32], sizes = [8, 32], strides = [1, 1]} : vector<8x128xf32> to vector<8x32xf32>
    %11 = vector.extract_strided_slice %8 {offsets = [0, 64], sizes = [8, 32], strides = [1, 1]} : vector<8x128xf32> to vector<8x32xf32>
    %12 = vector.extract_strided_slice %8 {offsets = [0, 96], sizes = [8, 32], strides = [1, 1]} : vector<8x128xf32> to vector<8x32xf32>
    %13 = tpu.concatenate %9, %9, %9, %9, %9, %9, %9, %9 in 1 : vector<8x32xf32>, vector<8x32xf32>, vector<8x32xf32>, vector<8x32xf32>, vector<8x32xf32>, vector<8x32xf32>, vector<8x32xf32>, vector<8x32xf32> -> vector<8x256xf32>
    %14 = vector.extract_strided_slice %10 {offsets = [0, 0], sizes = [1, 32], strides = [1, 1]} : vector<8x32xf32> to vector<1x32xf32>
    %15 = vector.extract_strided_slice %10 {offsets = [1, 0], sizes = [1, 32], strides = [1, 1]} : vector<8x32xf32> to vector<1x32xf32>
    %16 = vector.extract_strided_slice %10 {offsets = [2, 0], sizes = [1, 32], strides = [1, 1]} : vector<8x32xf32> to vector<1x32xf32>
    %17 = vector.extract_strided_slice %10 {offsets = [3, 0], sizes = [1, 32], strides = [1, 1]} : vector<8x32xf32> to vector<1x32xf32>
    %18 = vector.extract_strided_slice %10 {offsets = [4, 0], sizes = [1, 32], strides = [1, 1]} : vector<8x32xf32> to vector<1x32xf32>
    %19 = vector.extract_strided_slice %10 {offsets = [5, 0], sizes = [1, 32], strides = [1, 1]} : vector<8x32xf32> to vector<1x32xf32>
    %20 = vector.extract_strided_slice %10 {offsets = [6, 0], sizes = [1, 32], strides = [1, 1]} : vector<8x32xf32> to vector<1x32xf32>
    %21 = vector.extract_strided_slice %10 {offsets = [7, 0], sizes = [1, 32], strides = [1, 1]} : vector<8x32xf32> to vector<1x32xf32>
    %22 = tpu.concatenate %14, %15, %16, %17, %18, %19, %20, %21 in 1 : vector<1x32xf32>, vector<1x32xf32>, vector<1x32xf32>, vector<1x32xf32>, vector<1x32xf32>, vector<1x32xf32>, vector<1x32xf32>, vector<1x32xf32> -> vector<1x256xf32>
    %23 = vector.extract_strided_slice %11 {offsets = [0, 0], sizes = [1, 32], strides = [1, 1]} : vector<8x32xf32> to vector<1x32xf32>
    %24 = vector.extract_strided_slice %11 {offsets = [1, 0], sizes = [1, 32], strides = [1, 1]} : vector<8x32xf32> to vector<1x32xf32>
    %25 = vector.extract_strided_slice %11 {offsets = [2, 0], sizes = [1, 32], strides = [1, 1]} : vector<8x32xf32> to vector<1x32xf32>
    %26 = vector.extract_strided_slice %11 {offsets = [3, 0], sizes = [1, 32], strides = [1, 1]} : vector<8x32xf32> to vector<1x32xf32>
    %27 = vector.extract_strided_slice %11 {offsets = [4, 0], sizes = [1, 32], strides = [1, 1]} : vector<8x32xf32> to vector<1x32xf32>
    %28 = vector.extract_strided_slice %11 {offsets = [5, 0], sizes = [1, 32], strides = [1, 1]} : vector<8x32xf32> to vector<1x32xf32>
    %29 = vector.extract_strided_slice %11 {offsets = [6, 0], sizes = [1, 32], strides = [1, 1]} : vector<8x32xf32> to vector<1x32xf32>
    %30 = vector.extract_strided_slice %11 {offsets = [7, 0], sizes = [1, 32], strides = [1, 1]} : vector<8x32xf32> to vector<1x32xf32>
    %31 = tpu.concatenate %23, %24, %25, %26, %27, %28, %29, %30 in 1 : vector<1x32xf32>, vector<1x32xf32>, vector<1x32xf32>, vector<1x32xf32>, vector<1x32xf32>, vector<1x32xf32>, vector<1x32xf32>, vector<1x32xf32> -> vector<1x256xf32>
    %32 = vector.broadcast %22 : vector<1x256xf32> to vector<8x256xf32>
    %33 = arith.addf %13, %32 : vector<8x256xf32>
    %34 = arith.negf %33 : vector<8x256xf32>
    %35 = math.exp %34 : vector<8x256xf32>
    %cst_6 = arith.constant 1.000000e+00 : f32
    %36 = vector.broadcast %cst_6 : f32 to vector<8x256xf32>
    %37 = arith.addf %36, %35 : vector<8x256xf32>
    %38 = arith.divf %36, %37 : vector<8x256xf32>
    %39 = vector.broadcast %31 : vector<1x256xf32> to vector<8x256xf32>
    %40 = arith.mulf %38, %39 : vector<8x256xf32>
    %41 = vector.extract_strided_slice %0 {offsets = [0, 0], sizes = [8, 1], strides = [1, 1]} : vector<8x8xf32> to vector<8x1xf32>
    %42 = vector.shape_cast %41 : vector<8x1xf32> to vector<8x1xf32>
    %43 = vector.broadcast %42 : vector<8x1xf32> to vector<8x32xf32>
    %44 = vector.extract_strided_slice %0 {offsets = [0, 1], sizes = [8, 1], strides = [1, 1]} : vector<8x8xf32> to vector<8x1xf32>
    %45 = vector.shape_cast %44 : vector<8x1xf32> to vector<8x1xf32>
    %46 = vector.broadcast %45 : vector<8x1xf32> to vector<8x32xf32>
    %47 = vector.extract_strided_slice %0 {offsets = [0, 2], sizes = [8, 1], strides = [1, 1]} : vector<8x8xf32> to vector<8x1xf32>
    %48 = vector.shape_cast %47 : vector<8x1xf32> to vector<8x1xf32>
    %49 = vector.broadcast %48 : vector<8x1xf32> to vector<8x32xf32>
    %50 = vector.extract_strided_slice %0 {offsets = [0, 3], sizes = [8, 1], strides = [1, 1]} : vector<8x8xf32> to vector<8x1xf32>
    %51 = vector.shape_cast %50 : vector<8x1xf32> to vector<8x1xf32>
    %52 = vector.broadcast %51 : vector<8x1xf32> to vector<8x32xf32>
    %53 = vector.extract_strided_slice %0 {offsets = [0, 4], sizes = [8, 1], strides = [1, 1]} : vector<8x8xf32> to vector<8x1xf32>
    %54 = vector.shape_cast %53 : vector<8x1xf32> to vector<8x1xf32>
    %55 = vector.broadcast %54 : vector<8x1xf32> to vector<8x32xf32>
    %56 = vector.extract_strided_slice %0 {offsets = [0, 5], sizes = [8, 1], strides = [1, 1]} : vector<8x8xf32> to vector<8x1xf32>
    %57 = vector.shape_cast %56 : vector<8x1xf32> to vector<8x1xf32>
    %58 = vector.broadcast %57 : vector<8x1xf32> to vector<8x32xf32>
    %59 = vector.extract_strided_slice %0 {offsets = [0, 6], sizes = [8, 1], strides = [1, 1]} : vector<8x8xf32> to vector<8x1xf32>
    %60 = vector.shape_cast %59 : vector<8x1xf32> to vector<8x1xf32>
    %61 = vector.broadcast %60 : vector<8x1xf32> to vector<8x32xf32>
    %62 = vector.extract_strided_slice %0 {offsets = [0, 7], sizes = [8, 1], strides = [1, 1]} : vector<8x8xf32> to vector<8x1xf32>
    %63 = vector.shape_cast %62 : vector<8x1xf32> to vector<8x1xf32>
    %64 = vector.broadcast %63 : vector<8x1xf32> to vector<8x32xf32>
    %65 = tpu.concatenate %43, %46, %49, %52, %55, %58, %61, %64 in 1 : vector<8x32xf32>, vector<8x32xf32>, vector<8x32xf32>, vector<8x32xf32>, vector<8x32xf32>, vector<8x32xf32>, vector<8x32xf32>, vector<8x32xf32> -> vector<8x256xf32>
    %66 = arith.mulf %40, %65 : vector<8x256xf32>
    %67 = vector.extract_strided_slice %66 {offsets = [0, 0], sizes = [8, 128], strides = [1, 1]} : vector<8x256xf32> to vector<8x128xf32>
    %68 = vector.extract_strided_slice %66 {offsets = [0, 128], sizes = [8, 128], strides = [1, 1]} : vector<8x256xf32> to vector<8x128xf32>
    %69 = arith.addf %67, %68 : vector<8x128xf32>
    %70 = vector.extract_strided_slice %69 {offsets = [0, 0], sizes = [8, 64], strides = [1, 1]} : vector<8x128xf32> to vector<8x64xf32>
    %71 = vector.extract_strided_slice %69 {offsets = [0, 64], sizes = [8, 64], strides = [1, 1]} : vector<8x128xf32> to vector<8x64xf32>
    %72 = arith.addf %70, %71 : vector<8x64xf32>
    %73 = vector.extract_strided_slice %72 {offsets = [0, 0], sizes = [8, 32], strides = [1, 1]} : vector<8x64xf32> to vector<8x32xf32>
    %74 = vector.extract_strided_slice %72 {offsets = [0, 32], sizes = [8, 32], strides = [1, 1]} : vector<8x64xf32> to vector<8x32xf32>
    %75 = arith.addf %73, %74 : vector<8x32xf32>
    %76 = arith.addf %75, %12 : vector<8x32xf32>
    %cst_7 = arith.constant 0.000000e+00 : f32
    %77 = vector.broadcast %cst_7 : f32 to vector<8x32xf32>
    %78 = arith.maximumf %76, %77 : vector<8x32xf32>
    %c1 = arith.constant 1 : index
    %c0_8 = arith.constant 0 : index
    %c0_9 = arith.constant 0 : index
    %79 = vector.load %arg2[%c1, %c0_8, %c0_9] : memref<3x40x128xf32, #tpu.memory_space<vmem>>, vector<1x40x128xf32>
    %80 = vector.shape_cast %79 : vector<1x40x128xf32> to vector<40x128xf32>
    %81 = vector.extract_strided_slice %80 {offsets = [0, 0], sizes = [32, 128], strides = [1, 1]} : vector<40x128xf32> to vector<32x128xf32>
    %82 = vector.extract_strided_slice %80 {offsets = [32, 0], sizes = [1, 128], strides = [1, 1]} : vector<40x128xf32> to vector<1x128xf32>
    %cst_10 = arith.constant dense<0.000000e+00> : vector<8x128xf32>
    %83 = tpu.matmul %78, %81, %cst_10 {dimension_numbers = #tpu.dot_dimension_numbers<[1], [0], [0], [1], [0, 0, 1, 1], [], []>} : vector<8x32xf32>, vector<32x128xf32>, vector<8x128xf32> -> vector<8x128xf32>
    %84 = vector.broadcast %82 : vector<1x128xf32> to vector<8x128xf32>
    %85 = arith.addf %83, %84 : vector<8x128xf32>
    %86 = vector.extract_strided_slice %85 {offsets = [0, 0], sizes = [8, 32], strides = [1, 1]} : vector<8x128xf32> to vector<8x32xf32>
    %87 = vector.extract_strided_slice %85 {offsets = [0, 32], sizes = [8, 32], strides = [1, 1]} : vector<8x128xf32> to vector<8x32xf32>
    %88 = vector.extract_strided_slice %85 {offsets = [0, 64], sizes = [8, 32], strides = [1, 1]} : vector<8x128xf32> to vector<8x32xf32>
    %89 = vector.extract_strided_slice %85 {offsets = [0, 96], sizes = [8, 32], strides = [1, 1]} : vector<8x128xf32> to vector<8x32xf32>
    %90 = tpu.concatenate %86, %86, %86, %86, %86, %86, %86, %86 in 1 : vector<8x32xf32>, vector<8x32xf32>, vector<8x32xf32>, vector<8x32xf32>, vector<8x32xf32>, vector<8x32xf32>, vector<8x32xf32>, vector<8x32xf32> -> vector<8x256xf32>
    %91 = vector.extract_strided_slice %87 {offsets = [0, 0], sizes = [1, 32], strides = [1, 1]} : vector<8x32xf32> to vector<1x32xf32>
    %92 = vector.extract_strided_slice %87 {offsets = [1, 0], sizes = [1, 32], strides = [1, 1]} : vector<8x32xf32> to vector<1x32xf32>
    %93 = vector.extract_strided_slice %87 {offsets = [2, 0], sizes = [1, 32], strides = [1, 1]} : vector<8x32xf32> to vector<1x32xf32>
    %94 = vector.extract_strided_slice %87 {offsets = [3, 0], sizes = [1, 32], strides = [1, 1]} : vector<8x32xf32> to vector<1x32xf32>
    %95 = vector.extract_strided_slice %87 {offsets = [4, 0], sizes = [1, 32], strides = [1, 1]} : vector<8x32xf32> to vector<1x32xf32>
    %96 = vector.extract_strided_slice %87 {offsets = [5, 0], sizes = [1, 32], strides = [1, 1]} : vector<8x32xf32> to vector<1x32xf32>
    %97 = vector.extract_strided_slice %87 {offsets = [6, 0], sizes = [1, 32], strides = [1, 1]} : vector<8x32xf32> to vector<1x32xf32>
    %98 = vector.extract_strided_slice %87 {offsets = [7, 0], sizes = [1, 32], strides = [1, 1]} : vector<8x32xf32> to vector<1x32xf32>
    %99 = tpu.concatenate %91, %92, %93, %94, %95, %96, %97, %98 in 1 : vector<1x32xf32>, vector<1x32xf32>, vector<1x32xf32>, vector<1x32xf32>, vector<1x32xf32>, vector<1x32xf32>, vector<1x32xf32>, vector<1x32xf32> -> vector<1x256xf32>
    %100 = vector.extract_strided_slice %88 {offsets = [0, 0], sizes = [1, 32], strides = [1, 1]} : vector<8x32xf32> to vector<1x32xf32>
    %101 = vector.extract_strided_slice %88 {offsets = [1, 0], sizes = [1, 32], strides = [1, 1]} : vector<8x32xf32> to vector<1x32xf32>
    %102 = vector.extract_strided_slice %88 {offsets = [2, 0], sizes = [1, 32], strides = [1, 1]} : vector<8x32xf32> to vector<1x32xf32>
    %103 = vector.extract_strided_slice %88 {offsets = [3, 0], sizes = [1, 32], strides = [1, 1]} : vector<8x32xf32> to vector<1x32xf32>
    %104 = vector.extract_strided_slice %88 {offsets = [4, 0], sizes = [1, 32], strides = [1, 1]} : vector<8x32xf32> to vector<1x32xf32>
    %105 = vector.extract_strided_slice %88 {offsets = [5, 0], sizes = [1, 32], strides = [1, 1]} : vector<8x32xf32> to vector<1x32xf32>
    %106 = vector.extract_strided_slice %88 {offsets = [6, 0], sizes = [1, 32], strides = [1, 1]} : vector<8x32xf32> to vector<1x32xf32>
    %107 = vector.extract_strided_slice %88 {offsets = [7, 0], sizes = [1, 32], strides = [1, 1]} : vector<8x32xf32> to vector<1x32xf32>
    %108 = tpu.concatenate %100, %101, %102, %103, %104, %105, %106, %107 in 1 : vector<1x32xf32>, vector<1x32xf32>, vector<1x32xf32>, vector<1x32xf32>, vector<1x32xf32>, vector<1x32xf32>, vector<1x32xf32>, vector<1x32xf32> -> vector<1x256xf32>
    %109 = vector.broadcast %99 : vector<1x256xf32> to vector<8x256xf32>
    %110 = arith.addf %90, %109 : vector<8x256xf32>
    %111 = arith.negf %110 : vector<8x256xf32>
    %112 = math.exp %111 : vector<8x256xf32>
    %cst_11 = arith.constant 1.000000e+00 : f32
    %113 = vector.broadcast %cst_11 : f32 to vector<8x256xf32>
    %114 = arith.addf %113, %112 : vector<8x256xf32>
    %115 = arith.divf %113, %114 : vector<8x256xf32>
    %116 = vector.broadcast %108 : vector<1x256xf32> to vector<8x256xf32>
    %117 = arith.mulf %115, %116 : vector<8x256xf32>
    %118 = arith.mulf %117, %65 : vector<8x256xf32>
    %119 = vector.extract_strided_slice %118 {offsets = [0, 0], sizes = [8, 128], strides = [1, 1]} : vector<8x256xf32> to vector<8x128xf32>
    %120 = vector.extract_strided_slice %118 {offsets = [0, 128], sizes = [8, 128], strides = [1, 1]} : vector<8x256xf32> to vector<8x128xf32>
    %121 = arith.addf %119, %120 : vector<8x128xf32>
    %122 = vector.extract_strided_slice %121 {offsets = [0, 0], sizes = [8, 64], strides = [1, 1]} : vector<8x128xf32> to vector<8x64xf32>
    %123 = vector.extract_strided_slice %121 {offsets = [0, 64], sizes = [8, 64], strides = [1, 1]} : vector<8x128xf32> to vector<8x64xf32>
    %124 = arith.addf %122, %123 : vector<8x64xf32>
    %125 = vector.extract_strided_slice %124 {offsets = [0, 0], sizes = [8, 32], strides = [1, 1]} : vector<8x64xf32> to vector<8x32xf32>
    %126 = vector.extract_strided_slice %124 {offsets = [0, 32], sizes = [8, 32], strides = [1, 1]} : vector<8x64xf32> to vector<8x32xf32>
    %127 = arith.addf %125, %126 : vector<8x32xf32>
    %128 = arith.addf %127, %89 : vector<8x32xf32>
    %cst_12 = arith.constant 0.000000e+00 : f32
    %129 = vector.broadcast %cst_12 : f32 to vector<8x32xf32>
    %130 = arith.maximumf %128, %129 : vector<8x32xf32>
    %c2 = arith.constant 2 : index
    %c0_13 = arith.constant 0 : index
    %c0_14 = arith.constant 0 : index
    %131 = vector.load %arg2[%c2, %c0_13, %c0_14] : memref<3x40x128xf32, #tpu.memory_space<vmem>>, vector<1x40x128xf32>
    %132 = vector.shape_cast %131 : vector<1x40x128xf32> to vector<40x128xf32>
    %133 = vector.extract_strided_slice %132 {offsets = [0, 0], sizes = [32, 128], strides = [1, 1]} : vector<40x128xf32> to vector<32x128xf32>
    %134 = vector.extract_strided_slice %132 {offsets = [32, 0], sizes = [1, 128], strides = [1, 1]} : vector<40x128xf32> to vector<1x128xf32>
    %cst_15 = arith.constant dense<0.000000e+00> : vector<8x128xf32>
    %135 = tpu.matmul %130, %133, %cst_15 {dimension_numbers = #tpu.dot_dimension_numbers<[1], [0], [0], [1], [0, 0, 1, 1], [], []>} : vector<8x32xf32>, vector<32x128xf32>, vector<8x128xf32> -> vector<8x128xf32>
    %136 = vector.broadcast %134 : vector<1x128xf32> to vector<8x128xf32>
    %137 = arith.addf %135, %136 : vector<8x128xf32>
    %138 = vector.extract_strided_slice %137 {offsets = [0, 0], sizes = [8, 1], strides = [1, 1]} : vector<8x128xf32> to vector<8x1xf32>
    %139 = vector.extract_strided_slice %137 {offsets = [0, 32], sizes = [8, 1], strides = [1, 1]} : vector<8x128xf32> to vector<8x1xf32>
    %140 = vector.extract_strided_slice %137 {offsets = [0, 64], sizes = [8, 1], strides = [1, 1]} : vector<8x128xf32> to vector<8x1xf32>
    %141 = vector.extract_strided_slice %137 {offsets = [0, 96], sizes = [8, 1], strides = [1, 1]} : vector<8x128xf32> to vector<8x1xf32>
    %142 = tpu.concatenate %138, %138, %138, %138, %138, %138, %138, %138 in 1 : vector<8x1xf32>, vector<8x1xf32>, vector<8x1xf32>, vector<8x1xf32>, vector<8x1xf32>, vector<8x1xf32>, vector<8x1xf32>, vector<8x1xf32> -> vector<8x8xf32>
    %143 = vector.extract_strided_slice %139 {offsets = [0, 0], sizes = [1, 1], strides = [1, 1]} : vector<8x1xf32> to vector<1x1xf32>
    %144 = vector.extract_strided_slice %139 {offsets = [1, 0], sizes = [1, 1], strides = [1, 1]} : vector<8x1xf32> to vector<1x1xf32>
    %145 = vector.extract_strided_slice %139 {offsets = [2, 0], sizes = [1, 1], strides = [1, 1]} : vector<8x1xf32> to vector<1x1xf32>
    %146 = vector.extract_strided_slice %139 {offsets = [3, 0], sizes = [1, 1], strides = [1, 1]} : vector<8x1xf32> to vector<1x1xf32>
    %147 = vector.extract_strided_slice %139 {offsets = [4, 0], sizes = [1, 1], strides = [1, 1]} : vector<8x1xf32> to vector<1x1xf32>
    %148 = vector.extract_strided_slice %139 {offsets = [5, 0], sizes = [1, 1], strides = [1, 1]} : vector<8x1xf32> to vector<1x1xf32>
    %149 = vector.extract_strided_slice %139 {offsets = [6, 0], sizes = [1, 1], strides = [1, 1]} : vector<8x1xf32> to vector<1x1xf32>
    %150 = vector.extract_strided_slice %139 {offsets = [7, 0], sizes = [1, 1], strides = [1, 1]} : vector<8x1xf32> to vector<1x1xf32>
    %151 = tpu.concatenate %143, %144, %145, %146, %147, %148, %149, %150 in 1 : vector<1x1xf32>, vector<1x1xf32>, vector<1x1xf32>, vector<1x1xf32>, vector<1x1xf32>, vector<1x1xf32>, vector<1x1xf32>, vector<1x1xf32> -> vector<1x8xf32>
    %152 = vector.extract_strided_slice %140 {offsets = [0, 0], sizes = [1, 1], strides = [1, 1]} : vector<8x1xf32> to vector<1x1xf32>
    %153 = vector.extract_strided_slice %140 {offsets = [1, 0], sizes = [1, 1], strides = [1, 1]} : vector<8x1xf32> to vector<1x1xf32>
    %154 = vector.extract_strided_slice %140 {offsets = [2, 0], sizes = [1, 1], strides = [1, 1]} : vector<8x1xf32> to vector<1x1xf32>
    %155 = vector.extract_strided_slice %140 {offsets = [3, 0], sizes = [1, 1], strides = [1, 1]} : vector<8x1xf32> to vector<1x1xf32>
    %156 = vector.extract_strided_slice %140 {offsets = [4, 0], sizes = [1, 1], strides = [1, 1]} : vector<8x1xf32> to vector<1x1xf32>
    %157 = vector.extract_strided_slice %140 {offsets = [5, 0], sizes = [1, 1], strides = [1, 1]} : vector<8x1xf32> to vector<1x1xf32>
    %158 = vector.extract_strided_slice %140 {offsets = [6, 0], sizes = [1, 1], strides = [1, 1]} : vector<8x1xf32> to vector<1x1xf32>
    %159 = vector.extract_strided_slice %140 {offsets = [7, 0], sizes = [1, 1], strides = [1, 1]} : vector<8x1xf32> to vector<1x1xf32>
    %160 = tpu.concatenate %152, %153, %154, %155, %156, %157, %158, %159 in 1 : vector<1x1xf32>, vector<1x1xf32>, vector<1x1xf32>, vector<1x1xf32>, vector<1x1xf32>, vector<1x1xf32>, vector<1x1xf32>, vector<1x1xf32> -> vector<1x8xf32>
    %161 = vector.broadcast %151 : vector<1x8xf32> to vector<8x8xf32>
    %162 = arith.addf %142, %161 : vector<8x8xf32>
    %163 = arith.negf %162 : vector<8x8xf32>
    %164 = math.exp %163 : vector<8x8xf32>
    %cst_16 = arith.constant 1.000000e+00 : f32
    %165 = vector.broadcast %cst_16 : f32 to vector<8x8xf32>
    %166 = arith.addf %165, %164 : vector<8x8xf32>
    %167 = arith.divf %165, %166 : vector<8x8xf32>
    %168 = vector.broadcast %160 : vector<1x8xf32> to vector<8x8xf32>
    %169 = arith.mulf %167, %168 : vector<8x8xf32>
    %170 = arith.mulf %169, %0 : vector<8x8xf32>
    %cst_17 = arith.constant dense<0.000000e+00> : vector<8xf32>
    %171 = vector.multi_reduction <add>, %170, %cst_17 [1] : vector<8x8xf32> to vector<8xf32>
    %172 = vector.shape_cast %171 : vector<8xf32> to vector<8x1xf32>
    %173 = arith.addf %172, %141 : vector<8x1xf32>
    %c0_18 = arith.constant 0 : index
    %c0_19 = arith.constant 0 : index
    %174 = vector.load %arg3[%c0_18, %c0_19] : memref<8x1xf32, #tpu.memory_space<vmem>>, vector<8x1xf32>
    tpu.vector_store %arg3[%c0_18, %c0_19], %173 {strides = array<i32>} : memref<8x1xf32, #tpu.memory_space<vmem>>, vector<8x1xf32>,
    return
  }
}

</mosaic_0001>

<llo_original>
// kernel: tpu_custom_call.1
$region0: #{tpu_custom_call.1}
  #allocation0 [shape = 'u32[]', space=smem, size = 0x4, offset = 0x4, fixed_abs, tag = 'smem constant byte address 0x4 - core index']
  #allocation1 [shape = 'u32[144,128]{1,0:T(1,128)}', space=vmem, size = 0x12000, scoped, tag = 'internal scratch']
  %s0 = inlined_call_operand.hbm [shape: f32[8,16], index: 0, kind: input, shape index: {}]
  %s1 = inlined_call_operand.hbm [shape: f32[8,8], index: 1, kind: input, shape index: {}]
  %s2 = inlined_call_operand.hbm [shape: f32[3,40,128], index: 2, kind: input, shape index: {}]
  %s3 = inlined_call_operand.vmem [shape: f32[8,1], index: 3, kind: output, shape index: {}]
  %s4 = sld [smem:[#allocation0]]
  $region34: #{tpu_custom_call.1} parent=0
    _
  %s6 = ssub.s32 1, %s4
  %s7 = scalar_select 0, %s6, %s4
  $region1: #{tpu_custom_call.1} parent=0
    #allocation2 [shape = 'u8[4096]{0}', space=vmem, size = 0x1000, scoped, tag = 'input window, operand 0, single buffered']
    #allocation3 [shape = 's32[1]{0}', space=sflag, size = 0x4, scoped, tag = 'scoped memory for tpu_custom_call.1']
    #allocation4 [shape = 'u8[4096]{0}', space=vmem, size = 0x1000, scoped, tag = 'input window, operand 1, single buffered']
    #allocation5 [shape = 's32[1]{0}', space=sflag, size = 0x4, scoped, tag = 'scoped memory for tpu_custom_call.1']
    #allocation6 [shape = 'u8[61440]{0}', space=vmem, size = 0xf000, scoped, tag = 'input window, operand 2, single buffered']
    %8 = vsyncpa [#allocation3], 0
    %9 = vsyncpa [#allocation5], 0
    // Predicated region
    $region2: #{tpu_custom_call.1} parent=1 // pred_check
      _
    $region3: #{tpu_custom_call.1} parent=1 // pred_check_branch
      %11 = sbr.rel (0) target = $region5
    $region4: #{tpu_custom_call.1} parent=1 // pred_region
      %s13 = ssub.s32 128, 128
      %14 = vsyncadd [#allocation3], %s13
      %s16 = sshll.u32 [#allocation2], 4
      %s17 = int_to_ptr.vmem [resolvable:$true] %s16
      %19 = dma.hbm_to_vmem [thread:$0]  %s0, 128, %s17, [#allocation3]
    $region5: #{tpu_custom_call.1} parent=1 // pred_fallthru
      _
    // Predicated region
    $region6: #{tpu_custom_call.1} parent=1 // pred_check
      _
    $region7: #{tpu_custom_call.1} parent=1 // pred_check_branch
      %21 = sbr.rel (0) target = $region9
    $region8: #{tpu_custom_call.1} parent=1 // pred_region
      %s23 = ssub.s32 128, 128
      %24 = vsyncadd [#allocation5], %s23
      %s26 = sshll.u32 [#allocation4], 4
      %s27 = int_to_ptr.vmem [resolvable:$true] %s26
      %29 = dma.hbm_to_vmem [thread:$0]  %s1, 128, %s27, [#allocation5]
    $region9: #{tpu_custom_call.1} parent=1 // pred_fallthru
      _
    // Predicated region
    $region10: #{tpu_custom_call.1} parent=1 // pred_check
      _
    $region11: #{tpu_custom_call.1} parent=1 // pred_check_branch
      %31 = sbr.rel (0) target = $region13
    $region12: #{tpu_custom_call.1} parent=1 // pred_region
      %s33 = ssub.s32 1920, 1920
      %34 = vsyncadd [#allocation5], %s33
      %s35 = sshll.u32 [#allocation6], 4
      %s36 = int_to_ptr.vmem [resolvable:$true] %s35
      %41 = dma.hbm_to_vmem [thread:$0]  %s2, 1920, %s36, [#allocation5], 128, 128, 8
    $region13: #{tpu_custom_call.1} parent=1 // pred_fallthru
      _
    // Predicated region
    $region14: #{tpu_custom_call.1} parent=1 // pred_check
      _
    $region15: #{tpu_custom_call.1} parent=1 // pred_check_branch
      %43 = sbr.rel (0) target = $region17
    $region16: #{tpu_custom_call.1} parent=1 // pred_region
      %44 = dma.done [#allocation3], 128
    $region17: #{tpu_custom_call.1} parent=1 // pred_fallthru
      _
    // Predicated region
    $region18: #{tpu_custom_call.1} parent=1 // pred_check
      _
    $region19: #{tpu_custom_call.1} parent=1 // pred_check_branch
      %46 = sbr.rel (0) target = $region21
    $region20: #{tpu_custom_call.1} parent=1 // pred_region
      %47 = dma.done [#allocation5], 128
    $region21: #{tpu_custom_call.1} parent=1 // pred_fallthru
      _
    // Predicated region
    $region22: #{tpu_custom_call.1} parent=1 // pred_check
      _
    $region23: #{tpu_custom_call.1} parent=1 // pred_check_branch
      %49 = sbr.rel (0) target = $region25
    $region24: #{tpu_custom_call.1} parent=1 // pred_region
      %50 = dma.done [#allocation5], 1920
    $region25: #{tpu_custom_call.1} parent=1 // pred_fallthru
      _
    %v51 = vld [vmem:[#allocation4] sm:$0xff]
    %v52 = vld [vmem:[#allocation2] sm:$0xff]
    %v53 = vld [vmem:[#allocation6] sm:$0xff]
    %v54 = vld [vmem:[#allocation6 + $0x8] sm:$0xff]
    %v55 = vld [vmem:[#allocation6 + $0x20] sm:$0xff]
    %v56 = vlaneseq
    %v57 = vshrl.u32 %v56, 7
    %v58 = vsub.s32 0, %v57
    %v59 = vrot.slane %v55, %v58
    %vm60 = vcmask 130048
    %v62 = vsel %vm60, %v52, 0
    %64 = vmatprep.subr.mxu0 0.0
    %65 = vmatpush1.msra.mxu0 %v53
    %66 = vmatprep.subr.mxu0 0.0
    %67 = vmatpush1.msra.mxu0 %v54
    %68 = vmatprep.subr.mxu0 0.0
    %69 = vmatpush1.msra.mxu0 0.0
    %70 = vmatprep.subr.mxu0 0.0
    %71 = vmatpush1.msra.mxu0 0.0
    %72 = vmatprep.subr.mxu0 0.0
    %73 = vmatpush1.msra.mxu0 0.0
    %74 = vmatprep.subr.mxu0 0.0
    %75 = vmatpush1.msra.mxu0 0.0
    %76 = vmatprep.subr.mxu0 0.0
    %77 = vmatpush1.msra.mxu0 0.0
    %78 = vmatprep.subr.mxu0 0.0
    %79 = vmatpush1.msra.mxu0 0.0
    %80 = vmatprep.subr.mxu0 0.0
    %81 = vmatpush1.msra.mxu0 0.0
    %82 = vmatprep.subr.mxu0 0.0
    %83 = vmatpush1.msra.mxu0 0.0
    %84 = vmatprep.subr.mxu0 0.0
    %85 = vmatpush1.msra.mxu0 0.0
    %86 = vmatprep.subr.mxu0 0.0
    %87 = vmatpush1.msra.mxu0 0.0
    %88 = vmatprep.subr.mxu0 0.0
    %89 = vmatpush1.msra.mxu0 0.0
    %90 = vmatprep.subr.mxu0 0.0
    %91 = vmatpush1.msra.mxu0 0.0
    %92 = vmatprep.subr.mxu0 0.0
    %93 = vmatpush1.msra.mxu0 0.0
    %94 = vmatprep.subr.mxu0 0.0
    %95 = vmatpush1.msra.mxu0 0.0
    %96 = vmatprep.subr.mxu0 0.0
    %97 = vmatpush1.msra.mxu0 0.0
    %98 = vmatprep.subr.mxu0 0.0
    %99 = vmatpush1.msra.mxu0 0.0
    %100 = vmatprep.subr.mxu0 0.0
    %101 = vmatpush1.msra.mxu0 0.0
    %102 = vmatprep.subr.mxu0 0.0
    %103 = vmatpush1.msra.mxu0 0.0
    %104 = vmatprep.subr.mxu0 0.0
    %105 = vmatpush1.msra.mxu0 0.0
    %106 = vmatprep.subr.mxu0 0.0
    %107 = vmatpush1.msra.mxu0 0.0
    %108 = vmatprep.subr.mxu0 0.0
    %109 = vmatpush1.msra.mxu0 0.0
    %110 = vmatprep.subr.mxu0 0.0
    %111 = vmatpush1.msra.mxu0 0.0
    %112 = vmatprep.subr.mxu0 0.0
    %113 = vmatpush1.msra.mxu0 0.0
    %114 = vmatprep.subr.mxu0 0.0
    %115 = vmatpush1.msra.mxu0 0.0
    %116 = vmatprep.subr.mxu0 0.0
    %117 = vmatpush1.msra.mxu0 0.0
    %118 = vmatprep.subr.mxu0 0.0
    %119 = vmatpush1.msra.mxu0 0.0
    %120 = vmatprep.subr.mxu0 0.0
    %121 = vmatpush1.msra.mxu0 0.0
    %122 = vmatprep.subr.mxu0 0.0
    %123 = vmatpush1.msra.mxu0 0.0
    %124 = vmatprep.subr.mxu0 0.0
    %125 = vmatpush1.msra.mxu0 0.0
    %126 = vmatprep.subr.mxu0 0.0
    %127 = vmatpush1.msra.mxu0 0.0
    %128 = vmatprep.mubr.f32.mxu0 0.0
    %129 = vmatmul.mubr.f32.gmra.mrb[0].mxu0 %v62
    %v130 = vpop.f32.mrb[0].mxu0
    %v131 = vadd.f32 %v59, %v130
    %v132 = vpop.f32.mrb[0].mxu0
    %133 = vdwg.mxu0
    %135 = vrot.lane.b32.xlu0 %v131, 32
    %v136 = vpop.permute.xlu0 %135
    %138 = vrot.lane.b32.xlu0 %v131, 64
    %v139 = vpop.permute.xlu0 %138
    %141 = vrot.lane.b32.xlu0 %v131, 96
    %v142 = vpop.permute.xlu0 %141
    %vm144 = vcmask 261120
    %v145 = vsel %vm144, %v131, %v136
    %vm146 = vcmask 523264
    %v147 = vsel %vm146, %v145, %v139
    %vm148 = vcmask 785408
    %v149 = vsel %vm148, %v147, %v142
    %v150 = vrot.slane %v131, 1
    %v152 = vrot.slane %v131, 2
    %153 = vrot.lane.b32.xlu0 %v152, 32
    %v154 = vpop.permute.xlu0 %153
    %v156 = vrot.slane %v131, 3
    %157 = vrot.lane.b32.xlu0 %v156, 64
    %v158 = vpop.permute.xlu0 %157
    %v160 = vrot.slane %v131, 4
    %161 = vrot.lane.b32.xlu0 %v160, 96
    %v162 = vpop.permute.xlu0 %161
    %v164 = vrot.slane %v131, 5
    %v166 = vrot.slane %v131, 6
    %167 = vrot.lane.b32.xlu0 %v166, 32
    %v168 = vpop.permute.xlu0 %167
    %v170 = vrot.slane %v131, 7
    %171 = vrot.lane.b32.xlu0 %v170, 64
    %v172 = vpop.permute.xlu0 %171
    %v174 = vsel %vm144, %v142, %v150
    %v175 = vsel %vm146, %v174, %v154
    %v176 = vsel %vm148, %v175, %v158
    %v177 = vsel %vm144, %v162, %v164
    %v178 = vsel %vm146, %v177, %v168
    %v179 = vsel %vm148, %v178, %v172
    %180 = vrot.lane.b32.xlu0 %v150, 96
    %v181 = vpop.permute.xlu0 %180
    %184 = vrot.lane.b32.xlu0 %v156, 32
    %v185 = vpop.permute.xlu0 %184
    %187 = vrot.lane.b32.xlu0 %v160, 64
    %v188 = vpop.permute.xlu0 %187
    %190 = vrot.lane.b32.xlu0 %v164, 96
    %v191 = vpop.permute.xlu0 %190
    %194 = vrot.lane.b32.xlu0 %v170, 32
    %v195 = vpop.permute.xlu0 %194
    %v197 = vsel %vm144, %v139, %v181
    %v198 = vsel %vm146, %v197, %v152
    %v199 = vsel %vm148, %v198, %v185
    %v200 = vsel %vm144, %v188, %v191
    %v201 = vsel %vm146, %v200, %v166
    %v202 = vsel %vm148, %v201, %v195
    %v203 = vlaneseq
    %v204 = vshrl.u32 %v203, 7
    %v205 = vsub.s32 0, %v204
    %v206 = vrot.slane %v176, %v205
    %v207 = vlaneseq
    %v208 = vshrl.u32 %v207, 7
    %v209 = vsub.s32 0, %v208
    %v210 = vrot.slane %v179, %v209
    %v211 = vadd.f32 %v149, %v206
    %v212 = vadd.f32 %v149, %v210
    %v213 = vxor.u32 %v211, 2147483648
    %v214 = vxor.u32 %v212, 2147483648
    %v215 = vmul.f32 %v213, 1.442695
    %v216 = vpow.pop %v215
    %v217 = vmul.f32 %v214, 1.442695
    %v218 = vpow.pop %v217
    %v219 = vadd.f32 %v216, 1.0
    %v220 = vadd.f32 %v218, 1.0
    %v221 = vrcp.pop %v219
    %v222 = vmul.f32 1.0, %v221
    %v223 = vrcp.pop %v220
    %v224 = vmul.f32 1.0, %v223
    %v225 = vlaneseq
    %v226 = vshrl.u32 %v225, 7
    %v227 = vsub.s32 0, %v226
    %v228 = vrot.slane %v199, %v227
    %v229 = vlaneseq
    %v230 = vshrl.u32 %v229, 7
    %v231 = vsub.s32 0, %v230
    %v232 = vrot.slane %v202, %v231
    %v233 = vmul.f32 %v222, %v228
    %v234 = vmul.f32 %v224, %v232
    %236 = vset.pattern.permute.xlu0 0
    %237 = vperm.xlu0 %236, %v51
    %v238 = vpop.permute.xlu0 %237
    %240 = vset.pattern.permute.xlu0 1
    %241 = vperm.xlu0 %240, %v51
    %v242 = vpop.permute.xlu0 %241
    %244 = vset.pattern.permute.xlu0 2
    %245 = vperm.xlu0 %244, %v51
    %v246 = vpop.permute.xlu0 %245
    %248 = vset.pattern.permute.xlu0 3
    %249 = vperm.xlu0 %248, %v51
    %v250 = vpop.permute.xlu0 %249
    %252 = vset.pattern.permute.xlu0 4
    %253 = vperm.xlu0 %252, %v51
    %v254 = vpop.permute.xlu0 %253
    %256 = vset.pattern.permute.xlu0 5
    %257 = vperm.xlu0 %256, %v51
    %v258 = vpop.permute.xlu0 %257
    %260 = vset.pattern.permute.xlu0 6
    %261 = vperm.xlu0 %260, %v51
    %v262 = vpop.permute.xlu0 %261
    %264 = vset.pattern.permute.xlu0 7
    %265 = vperm.xlu0 %264, %v51
    %v266 = vpop.permute.xlu0 %265
    %v268 = vsel %vm144, %v238, %v242
    %v269 = vsel %vm146, %v268, %v246
    %v270 = vsel %vm148, %v269, %v250
    %v271 = vsel %vm144, %v254, %v258
    %v272 = vsel %vm146, %v271, %v262
    %v273 = vsel %vm148, %v272, %v266
    %v274 = vmul.f32 %v233, %v270
    %v275 = vmul.f32 %v234, %v273
    %v276 = vadd.f32 %v274, %v275
    %278 = vrot.lane.b32.xlu0 %v276, 64
    %v279 = vpop.permute.xlu0 %278
    %v281 = vadd.f32 %v276, %v279
    %283 = vrot.lane.b32.xlu0 %v281, 96
    %v284 = vpop.permute.xlu0 %283
    %v286 = vadd.f32 %v281, %v284
    %v287 = vadd.f32 %v286, %v136
    %v288 = vmax.f32 %v287, 0.0
    %s289 = scalar_lea.vmem [#allocation6], 40
    %v290 = vld [vmem:[%s289] sm:$0xff]
    %v291 = vld [vmem:[%s289 + $0x8] sm:$0xff]
    %v292 = vld [vmem:[%s289 + $0x10] sm:$0xff]
    %v293 = vld [vmem:[%s289 + $0x18] sm:$0xff]
    %v294 = vld [vmem:[%s289 + $0x20] sm:$0xff]
    %v295 = vlaneseq
    %v296 = vshrl.u32 %v295, 7
    %v297 = vsub.s32 0, %v296
    %v298 = vrot.slane %v294, %v297
    %v300 = vsel %vm144, %v288, 0
    %302 = vmatprep.subr.mxu0 0.0
    %303 = vmatpush1.msra.mxu0 %v290
    %304 = vmatprep.subr.mxu0 0.0
    %305 = vmatpush1.msra.mxu0 %v291
    %306 = vmatprep.subr.mxu0 0.0
    %307 = vmatpush1.msra.mxu0 %v292
    %308 = vmatprep.subr.mxu0 0.0
    %309 = vmatpush1.msra.mxu0 %v293
    %310 = vmatprep.subr.mxu0 0.0
    %311 = vmatpush1.msra.mxu0 0.0
    %312 = vmatprep.subr.mxu0 0.0
    %313 = vmatpush1.msra.mxu0 0.0
    %314 = vmatprep.subr.mxu0 0.0
    %315 = vmatpush1.msra.mxu0 0.0
    %316 = vmatprep.subr.mxu0 0.0
    %317 = vmatpush1.msra.mxu0 0.0
    %318 = vmatprep.subr.mxu0 0.0
    %319 = vmatpush1.msra.mxu0 0.0
    %320 = vmatprep.subr.mxu0 0.0
    %321 = vmatpush1.msra.mxu0 0.0
    %322 = vmatprep.subr.mxu0 0.0
    %323 = vmatpush1.msra.mxu0 0.0
    %324 = vmatprep.subr.mxu0 0.0
    %325 = vmatpush1.msra.mxu0 0.0
    %326 = vmatprep.subr.mxu0 0.0
    %327 = vmatpush1.msra.mxu0 0.0
    %328 = vmatprep.subr.mxu0 0.0
    %329 = vmatpush1.msra.mxu0 0.0
    %330 = vmatprep.subr.mxu0 0.0
    %331 = vmatpush1.msra.mxu0 0.0
    %332 = vmatprep.subr.mxu0 0.0
    %333 = vmatpush1.msra.mxu0 0.0
    %334 = vmatprep.subr.mxu0 0.0
    %335 = vmatpush1.msra.mxu0 0.0
    %336 = vmatprep.subr.mxu0 0.0
    %337 = vmatpush1.msra.mxu0 0.0
    %338 = vmatprep.subr.mxu0 0.0
    %339 = vmatpush1.msra.mxu0 0.0
    %340 = vmatprep.subr.mxu0 0.0
    %341 = vmatpush1.msra.mxu0 0.0
    %342 = vmatprep.subr.mxu0 0.0
    %343 = vmatpush1.msra.mxu0 0.0
    %344 = vmatprep.subr.mxu0 0.0
    %345 = vmatpush1.msra.mxu0 0.0
    %346 = vmatprep.subr.mxu0 0.0
    %347 = vmatpush1.msra.mxu0 0.0
    %348 = vmatprep.subr.mxu0 0.0
    %349 = vmatpush1.msra.mxu0 0.0
    %350 = vmatprep.subr.mxu0 0.0
    %351 = vmatpush1.msra.mxu0 0.0
    %352 = vmatprep.subr.mxu0 0.0
    %353 = vmatpush1.msra.mxu0 0.0
    %354 = vmatprep.subr.mxu0 0.0
    %355 = vmatpush1.msra.mxu0 0.0
    %356 = vmatprep.subr.mxu0 0.0
    %357 = vmatpush1.msra.mxu0 0.0
    %358 = vmatprep.subr.mxu0 0.0
    %359 = vmatpush1.msra.mxu0 0.0
    %360 = vmatprep.subr.mxu0 0.0
    %361 = vmatpush1.msra.mxu0 0.0
    %362 = vmatprep.subr.mxu0 0.0
    %363 = vmatpush1.msra.mxu0 0.0
    %364 = vmatprep.subr.mxu0 0.0
    %365 = vmatpush1.msra.mxu0 0.0
    %366 = vmatprep.mubr.f32.mxu0 0.0
    %367 = vmatmul.mubr.f32.gmra.mrb[0].mxu0 %v300
    %v368 = vpop.f32.mrb[0].mxu0
    %v369 = vadd.f32 %v298, %v368
    %v370 = vpop.f32.mrb[0].mxu0
    %371 = vdwg.mxu0
    %373 = vrot.lane.b32.xlu0 %v369, 32
    %v374 = vpop.permute.xlu0 %373
    %376 = vrot.lane.b32.xlu0 %v369, 64
    %v377 = vpop.permute.xlu0 %376
    %379 = vrot.lane.b32.xlu0 %v369, 96
    %v380 = vpop.permute.xlu0 %379
    %v382 = vsel %vm144, %v369, %v374
    %v383 = vsel %vm146, %v382, %v377
    %v384 = vsel %vm148, %v383, %v380
    %v385 = vrot.slane %v369, 1
    %v387 = vrot.slane %v369, 2
    %388 = vrot.lane.b32.xlu0 %v387, 32
    %v389 = vpop.permute.xlu0 %388
    %v391 = vrot.slane %v369, 3
    %392 = vrot.lane.b32.xlu0 %v391, 64
    %v393 = vpop.permute.xlu0 %392
    %v395 = vrot.slane %v369, 4
    %396 = vrot.lane.b32.xlu0 %v395, 96
    %v397 = vpop.permute.xlu0 %396
    %v399 = vrot.slane %v369, 5
    %v401 = vrot.slane %v369, 6
    %402 = vrot.lane.b32.xlu0 %v401, 32
    %v403 = vpop.permute.xlu0 %402
    %v405 = vrot.slane %v369, 7
    %406 = vrot.lane.b32.xlu0 %v405, 64
    %v407 = vpop.permute.xlu0 %406
    %v409 = vsel %vm144, %v380, %v385
    %v410 = vsel %vm146, %v409, %v389
    %v411 = vsel %vm148, %v410, %v393
    %v412 = vsel %vm144, %v397, %v399
    %v413 = vsel %vm146, %v412, %v403
    %v414 = vsel %vm148, %v413, %v407
    %415 = vrot.lane.b32.xlu0 %v385, 96
    %v416 = vpop.permute.xlu0 %415
    %419 = vrot.lane.b32.xlu0 %v391, 32
    %v420 = vpop.permute.xlu0 %419
    %422 = vrot.lane.b32.xlu0 %v395, 64
    %v423 = vpop.permute.xlu0 %422
    %425 = vrot.lane.b32.xlu0 %v399, 96
    %v426 = vpop.permute.xlu0 %425
    %429 = vrot.lane.b32.xlu0 %v405, 32
    %v430 = vpop.permute.xlu0 %429
    %v432 = vsel %vm144, %v377, %v416
    %v433 = vsel %vm146, %v432, %v387
    %v434 = vsel %vm148, %v433, %v420
    %v435 = vsel %vm144, %v423, %v426
    %v436 = vsel %vm146, %v435, %v401
    %v437 = vsel %vm148, %v436, %v430
    %v438 = vlaneseq
    %v439 = vshrl.u32 %v438, 7
    %v440 = vsub.s32 0, %v439
    %v441 = vrot.slane %v411, %v440
    %v442 = vlaneseq
    %v443 = vshrl.u32 %v442, 7
    %v444 = vsub.s32 0, %v443
    %v445 = vrot.slane %v414, %v444
    %v446 = vadd.f32 %v384, %v441
    %v447 = vadd.f32 %v384, %v445
    %v448 = vxor.u32 %v446, 2147483648
    %v449 = vxor.u32 %v447, 2147483648
    %v450 = vmul.f32 %v448, 1.442695
    %v451 = vpow.pop %v450
    %v452 = vmul.f32 %v449, 1.442695
    %v453 = vpow.pop %v452
    %v454 = vadd.f32 %v451, 1.0
    %v455 = vadd.f32 %v453, 1.0
    %v456 = vrcp.pop %v454
    %v457 = vmul.f32 1.0, %v456
    %v458 = vrcp.pop %v455
    %v459 = vmul.f32 1.0, %v458
    %v460 = vlaneseq
    %v461 = vshrl.u32 %v460, 7
    %v462 = vsub.s32 0, %v461
    %v463 = vrot.slane %v434, %v462
    %v464 = vlaneseq
    %v465 = vshrl.u32 %v464, 7
    %v466 = vsub.s32 0, %v465
    %v467 = vrot.slane %v437, %v466
    %v468 = vmul.f32 %v457, %v463
    %v469 = vmul.f32 %v459, %v467
    %v470 = vmul.f32 %v468, %v270
    %v471 = vmul.f32 %v469, %v273
    %v472 = vadd.f32 %v470, %v471
    %474 = vrot.lane.b32.xlu0 %v472, 64
    %v475 = vpop.permute.xlu0 %474
    %v477 = vadd.f32 %v472, %v475
    %479 = vrot.lane.b32.xlu0 %v477, 96
    %v480 = vpop.permute.xlu0 %479
    %v482 = vadd.f32 %v477, %v480
    %v483 = vadd.f32 %v482, %v374
    %v484 = vmax.f32 %v483, 0.0
    %s485 = scalar_lea.vmem [#allocation6], 80
    %v486 = vld [vmem:[%s485] sm:$0xff]
    %v487 = vld [vmem:[%s485 + $0x8] sm:$0xff]
    %v488 = vld [vmem:[%s485 + $0x10] sm:$0xff]
    %v489 = vld [vmem:[%s485 + $0x18] sm:$0xff]
    %v490 = vld [vmem:[%s485 + $0x20] sm:$0xff]
    %v491 = vlaneseq
    %v492 = vshrl.u32 %v491, 7
    %v493 = vsub.s32 0, %v492
    %v494 = vrot.slane %v490, %v493
    %v496 = vsel %vm144, %v484, 0
    %498 = vmatprep.subr.mxu0 0.0
    %499 = vmatpush1.msra.mxu0 %v486
    %500 = vmatprep.subr.mxu0 0.0
    %501 = vmatpush1.msra.mxu0 %v487
    %502 = vmatprep.subr.mxu0 0.0
    %503 = vmatpush1.msra.mxu0 %v488
    %504 = vmatprep.subr.mxu0 0.0
    %505 = vmatpush1.msra.mxu0 %v489
    %506 = vmatprep.subr.mxu0 0.0
    %507 = vmatpush1.msra.mxu0 0.0
    %508 = vmatprep.subr.mxu0 0.0
    %509 = vmatpush1.msra.mxu0 0.0
    %510 = vmatprep.subr.mxu0 0.0
    %511 = vmatpush1.msra.mxu0 0.0
    %512 = vmatprep.subr.mxu0 0.0
    %513 = vmatpush1.msra.mxu0 0.0
    %514 = vmatprep.subr.mxu0 0.0
    %515 = vmatpush1.msra.mxu0 0.0
    %516 = vmatprep.subr.mxu0 0.0
    %517 = vmatpush1.msra.mxu0 0.0
    %518 = vmatprep.subr.mxu0 0.0
    %519 = vmatpush1.msra.mxu0 0.0
    %520 = vmatprep.subr.mxu0 0.0
    %521 = vmatpush1.msra.mxu0 0.0
    %522 = vmatprep.subr.mxu0 0.0
    %523 = vmatpush1.msra.mxu0 0.0
    %524 = vmatprep.subr.mxu0 0.0
    %525 = vmatpush1.msra.mxu0 0.0
    %526 = vmatprep.subr.mxu0 0.0
    %527 = vmatpush1.msra.mxu0 0.0
    %528 = vmatprep.subr.mxu0 0.0
    %529 = vmatpush1.msra.mxu0 0.0
    %530 = vmatprep.subr.mxu0 0.0
    %531 = vmatpush1.msra.mxu0 0.0
    %532 = vmatprep.subr.mxu0 0.0
    %533 = vmatpush1.msra.mxu0 0.0
    %534 = vmatprep.subr.mxu0 0.0
    %535 = vmatpush1.msra.mxu0 0.0
    %536 = vmatprep.subr.mxu0 0.0
    %537 = vmatpush1.msra.mxu0 0.0
    %538 = vmatprep.subr.mxu0 0.0
    %539 = vmatpush1.msra.mxu0 0.0
    %540 = vmatprep.subr.mxu0 0.0
    %541 = vmatpush1.msra.mxu0 0.0
    %542 = vmatprep.subr.mxu0 0.0
    %543 = vmatpush1.msra.mxu0 0.0
    %544 = vmatprep.subr.mxu0 0.0
    %545 = vmatpush1.msra.mxu0 0.0
    %546 = vmatprep.subr.mxu0 0.0
    %547 = vmatpush1.msra.mxu0 0.0
    %548 = vmatprep.subr.mxu0 0.0
    %549 = vmatpush1.msra.mxu0 0.0
    %550 = vmatprep.subr.mxu0 0.0
    %551 = vmatpush1.msra.mxu0 0.0
    %552 = vmatprep.subr.mxu0 0.0
    %553 = vmatpush1.msra.mxu0 0.0
    %554 = vmatprep.subr.mxu0 0.0
    %555 = vmatpush1.msra.mxu0 0.0
    %556 = vmatprep.subr.mxu0 0.0
    %557 = vmatpush1.msra.mxu0 0.0
    %558 = vmatprep.subr.mxu0 0.0
    %559 = vmatpush1.msra.mxu0 0.0
    %560 = vmatprep.subr.mxu0 0.0
    %561 = vmatpush1.msra.mxu0 0.0
    %562 = vmatprep.mubr.f32.mxu0 0.0
    %563 = vmatmul.mubr.f32.gmra.mrb[0].mxu0 %v496
    %v564 = vpop.f32.mrb[0].mxu0
    %v565 = vadd.f32 %v494, %v564
    %v566 = vpop.f32.mrb[0].mxu0
    %567 = vdwg.mxu0
    %569 = vrot.lane.b32.xlu0 %v565, 1
    %v570 = vpop.permute.xlu0 %569
    %572 = vrot.lane.b32.xlu0 %v565, 2
    %v573 = vpop.permute.xlu0 %572
    %575 = vrot.lane.b32.xlu0 %v565, 3
    %v576 = vpop.permute.xlu0 %575
    %578 = vrot.lane.b32.xlu0 %v565, 4
    %v579 = vpop.permute.xlu0 %578
    %581 = vrot.lane.b32.xlu0 %v565, 5
    %v582 = vpop.permute.xlu0 %581
    %584 = vrot.lane.b32.xlu0 %v565, 6
    %v585 = vpop.permute.xlu0 %584
    %587 = vrot.lane.b32.xlu0 %v565, 7
    %v588 = vpop.permute.xlu0 %587
    %vm590 = vcmask 7168
    %v591 = vsel %vm590, %v565, %v570
    %vm592 = vcmask 15360
    %v593 = vsel %vm592, %v591, %v573
    %vm594 = vcmask 23552
    %v595 = vsel %vm594, %v593, %v576
    %vm596 = vcmask 31744
    %v597 = vsel %vm596, %v595, %v579
    %vm598 = vcmask 39936
    %v599 = vsel %vm598, %v597, %v582
    %vm600 = vcmask 48128
    %v601 = vsel %vm600, %v599, %v585
    %vm602 = vcmask 56320
    %v603 = vsel %vm602, %v601, %v588
    %604 = vrot.lane.b32.xlu0 %v565, 96
    %v605 = vpop.permute.xlu0 %604
    %v607 = vrot.slane %v565, 1
    %608 = vrot.lane.b32.xlu0 %v607, 97
    %v609 = vpop.permute.xlu0 %608
    %v611 = vrot.slane %v565, 2
    %612 = vrot.lane.b32.xlu0 %v611, 98
    %v613 = vpop.permute.xlu0 %612
    %v615 = vrot.slane %v565, 3
    %616 = vrot.lane.b32.xlu0 %v615, 99
    %v617 = vpop.permute.xlu0 %616
    %v619 = vrot.slane %v565, 4
    %620 = vrot.lane.b32.xlu0 %v619, 100
    %v621 = vpop.permute.xlu0 %620
    %v623 = vrot.slane %v565, 5
    %624 = vrot.lane.b32.xlu0 %v623, 101
    %v625 = vpop.permute.xlu0 %624
    %v627 = vrot.slane %v565, 6
    %628 = vrot.lane.b32.xlu0 %v627, 102
    %v629 = vpop.permute.xlu0 %628
    %v631 = vrot.slane %v565, 7
    %632 = vrot.lane.b32.xlu0 %v631, 103
    %v633 = vpop.permute.xlu0 %632
    %v635 = vsel %vm590, %v605, %v609
    %v636 = vsel %vm592, %v635, %v613
    %v637 = vsel %vm594, %v636, %v617
    %v638 = vsel %vm596, %v637, %v621
    %v639 = vsel %vm598, %v638, %v625
    %v640 = vsel %vm600, %v639, %v629
    %v641 = vsel %vm602, %v640, %v633
    %642 = vrot.lane.b32.xlu0 %v565, 64
    %v643 = vpop.permute.xlu0 %642
    %645 = vrot.lane.b32.xlu0 %v607, 65
    %v646 = vpop.permute.xlu0 %645
    %648 = vrot.lane.b32.xlu0 %v611, 66
    %v649 = vpop.permute.xlu0 %648
    %651 = vrot.lane.b32.xlu0 %v615, 67
    %v652 = vpop.permute.xlu0 %651
    %654 = vrot.lane.b32.xlu0 %v619, 68
    %v655 = vpop.permute.xlu0 %654
    %657 = vrot.lane.b32.xlu0 %v623, 69
    %v658 = vpop.permute.xlu0 %657
    %660 = vrot.lane.b32.xlu0 %v627, 70
    %v661 = vpop.permute.xlu0 %660
    %663 = vrot.lane.b32.xlu0 %v631, 71
    %v664 = vpop.permute.xlu0 %663
    %v666 = vsel %vm590, %v643, %v646
    %v667 = vsel %vm592, %v666, %v649
    %v668 = vsel %vm594, %v667, %v652
    %v669 = vsel %vm596, %v668, %v655
    %v670 = vsel %vm598, %v669, %v658
    %v671 = vsel %vm600, %v670, %v661
    %v672 = vsel %vm602, %v671, %v664
    %v673 = vlaneseq
    %v674 = vshrl.u32 %v673, 7
    %v675 = vsub.s32 0, %v674
    %v676 = vrot.slane %v641, %v675
    %v677 = vadd.f32 %v603, %v676
    %v678 = vxor.u32 %v677, 2147483648
    %v679 = vmul.f32 %v678, 1.442695
    %v680 = vpow.pop %v679
    %v681 = vadd.f32 %v680, 1.0
    %v682 = vrcp.pop %v681
    %v683 = vmul.f32 1.0, %v682
    %v684 = vlaneseq
    %v685 = vshrl.u32 %v684, 7
    %v686 = vsub.s32 0, %v685
    %v687 = vrot.slane %v672, %v686
    %v688 = vmul.f32 %v683, %v687
    %v689 = vmul.f32 %v688, %v51
    %vm690 = vcmask 64512
    %v691 = vsel %vm690, %v689, 0.0
    %692 = vadd.xlane.f32.xlu0 %v691
    %v693 = vpop.xlane.xlu0 %692
    %v694 = vadd.f32 %v693, %v565
    %696 = vrot.lane.b32.xlu0 %v694, 32
    %v697 = vpop.permute.xlu0 %696
    %699 = vst.msk [vmem:[%s3] sm:$0xff] %vm590, %v697
    // Predicated region
    $region26: #{tpu_custom_call.1} parent=1 // pred_check
      _
    $region27: #{tpu_custom_call.1} parent=1 // pred_check_branch
      %701 = sbr.rel (0) target = $region29
    $region28: #{tpu_custom_call.1} parent=1 // pred_region
      _
    $region29: #{tpu_custom_call.1} parent=1 // pred_fallthru
      _
    // Predicated region
    $region30: #{tpu_custom_call.1} parent=1 // pred_check
      _
    $region31: #{tpu_custom_call.1} parent=1 // pred_check_branch
      %703 = sbr.rel (0) target = $region33
    $region32: #{tpu_custom_call.1} parent=1 // pred_region
      _
    $region33: #{tpu_custom_call.1} parent=1 // pred_fallthru
      _
    %704 = vsyncpa [#allocation3], 1
    %705 = vsyncpa [#allocation5], 1

</llo_original>
